<compile_context>
chip_gen: v6e
topology: v6e:2x2x1
jax: 0.10.0
libtpu: 0.0.40
codegen_flags: <defaults>
</compile_context>

<pallas_src>
import functools

import jax
import jax.numpy as jnp
from jax.experimental import pallas as pl
from jax.experimental.pallas import tpu as pltpu


# ----------------------------- tiling helpers ------------------------------

def _vmem_capacity_bytes():
    try:
        return int(pltpu.get_tpu_info().vmem_capacity_bytes)
    except Exception:
        return 64 << 20  # conservative (v7x per-TensorCore VMEM)


def _plan_tiles(n, fin, hc, heads):
    """Pick the destination-row tile TM and a vmem_limit for both kernels.

    All operands are double-buffered by the BlockSpec pipeline (including the
    grid-invariant residents), so the budget counts 2x for every input/output.
    """
    cap = _vmem_capacity_bytes()
    budget = int(cap * 0.70)  # headroom for compiler scratch / packing

    # attention kernel: resident xp (bf16) + a_src_t (f32); per-row streams
    res_att = 2 * (n * hc * 2) + 2 * (heads * n * 4)
    row_att = 24 * n + 8 * heads + 4 * hc       # nq stream + f32 temps + out
    # projection kernel: resident w + att matrix (bf16); per-row x / xp / a
    res_proj = 2 * (fin * hc * 2) + 2 * (hc * 2 * heads * 2)
    row_proj = 4 * fin + 8 * hc + 16 * heads + 4 * hc

    resident = max(res_att, res_proj)
    per_row = max(row_att, row_proj)
    stream_budget = max(budget - resident, 8 * per_row)
    max_rows = max(8, stream_budget // per_row)

    if n % 8 != 0:
        # Fallback: single full block.  For large irregular graphs, pad N to a
        # multiple of 8 upstream instead (padded rows have nq == 0 everywhere
        # and do not leak into real rows).
        tm = n
    else:
        tm = 8
        # powers of two that divide n, capped at 512 rows, within the VMEM
        # budget, and keeping >= 2 grid steps for the 'parallel' axis (v7x
        # megacore) whenever the graph allows it.
        while (tm * 2 <= min(512, max_rows)
               and n % (tm * 2) == 0
               and tm * 2 <= max(n // 2, 8)):
            tm *= 2

    need = resident + tm * per_row
    vmem_limit = int(min(cap, max(2 * need, 32 << 20)))
    return tm, vmem_limit


def _block_diag_att(att):
    """(H, C) attention vector -> (H*C, H) block-diagonal matrix so that
    xp @ mat computes the per-head attention score with one MXU matmul."""
    h, c = att.shape
    eye = jnp.eye(h, dtype=att.dtype)                       # (H, H)
    return (att[:, :, None] * eye[:, None, :]).reshape(h * c, h)


# ----------------------------- Pallas kernels ------------------------------

def project_kernel(x_ref, w_ref, att_mat_ref, xp_ref, a_ref):
    # x: (TM, Fin) bf16, w: (Fin, H*C) bf16, att_mat: (H*C, 2H) bf16
    xp = jnp.dot(x_ref[...], w_ref[...],
                 preferred_element_type=jnp.float32)        # (TM, H*C) f32 acc
    xp_bf = xp.astype(jnp.bfloat16)
    xp_ref[...] = xp_bf                                     # bf16 end-to-end
    # fused a_dst | a_src scores: one small MXU matmul, one (TM, 2H) store
    a_ref[...] = jnp.dot(xp_bf, att_mat_ref[...],
                         preferred_element_type=jnp.float32)


def attn_apply_kernel(xp_ref, a_dst_ref, a_src_t_ref, nq_ref, o_ref,
                      *, heads, out_ch):
    # xp: (N, H*C) bf16 resident, a_dst: (TM, H) f32 tile,
    # a_src_t: (H, N) f32 resident, nq: (TM, N) bf16 tile, o: (TM, H*C) bf16
    xp = xp_ref[...]
    a_dst = a_dst_ref[...]
    a_src_t = a_src_t_ref[...]
    nq_f = nq_ref[...].astype(jnp.float32)                  # hoisted cast

    # additive edge mask, hoisted out of the head loop (self-loops guarantee
    # every row has at least one unmasked entry)
    add_mask = jnp.where(nq_f > 0.0, 0.0, jnp.float32(-1e30))  # (TM, N)

    outs = []
    for h in range(heads):                                   # static head loop
        lo = h * out_ch
        s = a_dst[:, h:h + 1] + a_src_t[h:h + 1, :]          # (TM, N) f32
        s = jnp.maximum(s, 0.2 * s)                          # leaky_relu(0.2)
        s = s + add_mask                                     # mask non-edges
        m = jnp.max(s, axis=1, keepdims=True)
        e = jnp.exp(s - m)                                   # masked -> 0
        denom = jnp.sum(e, axis=1, keepdims=True)
        inv = pl.reciprocal(jnp.maximum(denom, 1e-30), approx=True)  # (TM, 1)
        # weight the messages before the matmul; normalize the (TM, C) result
        w_edge = (e * nq_f).astype(jnp.bfloat16)             # (TM, N)
        out_h = jnp.dot(w_edge, xp[:, lo:lo + out_ch],
                        preferred_element_type=jnp.float32)  # (TM, C)
        outs.append(out_h * inv)

    out = outs[0] if heads == 1 else jnp.concatenate(outs, axis=1)  # (TM, H*C)
    # + bias (== ones) from QGATConv, then relu from GAT.forward; one
    # lane-dense store for the whole tile.
    o_ref[...] = jnp.maximum(out + 1.0, 0.0).astype(o_ref.dtype)


# ------------------------------ JAX wrappers --------------------------------

def qgat_project(x_bf, w_bf, att_mat_bf, *, heads, out_ch, tm, vmem_limit):
    n, fin = x_bf.shape
    hc = heads * out_ch
    return pl.pallas_call(
        project_kernel,
        out_shape=(jax.ShapeDtypeStruct((n, hc), jnp.bfloat16),
                   jax.ShapeDtypeStruct((n, 2 * heads), jnp.float32)),
        grid=(n // tm,),
        in_specs=[pl.BlockSpec((tm, fin), lambda i: (i, 0)),       # x row tile
                  pl.BlockSpec((fin, hc), lambda i: (0, 0)),       # w (resident)
                  pl.BlockSpec((hc, 2 * heads), lambda i: (0, 0))],  # att (resident)
        out_specs=(pl.BlockSpec((tm, hc), lambda i: (i, 0)),
                   pl.BlockSpec((tm, 2 * heads), lambda i: (i, 0))),
        compiler_params=pltpu.CompilerParams(
            dimension_semantics=("parallel",),
            vmem_limit_bytes=vmem_limit),
    )(x_bf, w_bf, att_mat_bf)


def qgat_attend(xp, a_dst, a_src_t, nq_bf, *, heads, out_ch, tm, vmem_limit):
    n = xp.shape[0]
    hc = heads * out_ch
    kernel = functools.partial(attn_apply_kernel, heads=heads, out_ch=out_ch)
    return pl.pallas_call(
        kernel,
        out_shape=jax.ShapeDtypeStruct((n, hc), jnp.bfloat16),
        grid=(n // tm,),
        in_specs=[pl.BlockSpec((n, hc), lambda i: (0, 0)),         # xp (resident, bf16)
                  pl.BlockSpec((tm, heads), lambda i: (i, 0)),     # a_dst row tile
                  pl.BlockSpec((heads, n), lambda i: (0, 0)),      # a_src_t (resident)
                  pl.BlockSpec((tm, n), lambda i: (i, 0))],        # nq row tile (bf16)
        out_specs=pl.BlockSpec((tm, hc), lambda i: (i, 0)),
        compiler_params=pltpu.CompilerParams(
            dimension_semantics=("parallel",),
            vmem_limit_bytes=vmem_limit),
    )(xp, a_dst, a_src_t, nq_bf)


def qgat_conv(x, w, att_src, att_dst, nq_bf, *, heads, out_ch):
    n, fin = x.shape
    hc = heads * out_ch
    tm, vmem_limit = _plan_tiles(n, fin, hc, heads)

    # fused (H*C, 2H) attention matrix: columns [0:H] -> a_dst, [H:2H] -> a_src
    att_mat = jnp.concatenate(
        [_block_diag_att(att_dst), _block_diag_att(att_src)], axis=1)

    # pre-cast loop-invariant operands once in the wrapper (not per grid step)
    x_bf = x.astype(jnp.bfloat16)
    w_bf = w.astype(jnp.bfloat16)
    att_mat_bf = att_mat.astype(jnp.bfloat16)

    xp, a_both = qgat_project(x_bf, w_bf, att_mat_bf,
                              heads=heads, out_ch=out_ch,
                              tm=tm, vmem_limit=vmem_limit)
    a_dst = a_both[:, :heads]                 # (N, H) f32
    a_src_t = a_both[:, heads:].T             # tiny (H, N) transpose, XLA side
    return qgat_attend(xp, a_dst, a_src_t, nq_bf,
                       heads=heads, out_ch=out_ch,
                       tm=tm, vmem_limit=vmem_limit)


def gat_forward(x, nq, pool_mat, params):
    # eval-mode: F.dropout is a no-op
    heads, hidden = params["heads"], params["hidden"]
    nq_bf = nq.astype(jnp.bfloat16)           # streamed as bf16 (cast once)
    for (w, a_src, a_dst) in params["convs"]:
        x = qgat_conv(x, w, a_src, a_dst, nq_bf, heads=heads, out_ch=hidden)
    # Tiny global pooling + linear classifier: plain XLA (per perf review —
    # a dedicated grid=(1,) pallas_call gains nothing here).
    pooled = pool_mat @ x.astype(jnp.float32)                 # (B, H*hidden)
    return pooled @ params["wc"] + params["bc"]               # (B, out)


# ------------------------------- demo setup ---------------------------------

def make_params(key, in_channels, hidden, out_channels, num_layers, heads):
    params = {"heads": heads, "hidden": hidden, "convs": []}
    fin = in_channels
    for _ in range(num_layers):
        key, k1, k2, k3 = jax.random.split(key, 4)
        scale_w = (6.0 / (fin + heads * hidden)) ** 0.5
        w = jax.random.uniform(k1, (fin, heads * hidden), jnp.float32, -scale_w, scale_w)
        scale_a = (6.0 / (1 + hidden)) ** 0.5
        a_src = jax.random.uniform(k2, (heads, hidden), jnp.float32, -scale_a, scale_a)
        a_dst = jax.random.uniform(k3, (heads, hidden), jnp.float32, -scale_a, scale_a)
        params["convs"].append((w, a_src, a_dst))
        fin = heads * hidden
    key, k1, k2 = jax.random.split(key, 3)
    scale_c = (6.0 / (heads * hidden + out_channels)) ** 0.5
    params["wc"] = jax.random.uniform(k1, (heads * hidden, out_channels),
                                      jnp.float32, -scale_c, scale_c)
    params["bc"] = jax.random.uniform(k2, (1, out_channels), jnp.float32, -0.1, 0.1)
    return params


if __name__ == "__main__":
    N = 16            # nodes (2 graphs of 8 nodes)
    IN = 8            # in_channels
    HIDDEN = 16       # hidden_channels (per head)
    OUT = 4           # out_channels (classes)
    LAYERS = 2
    HEADS = 2
    B = 2             # graphs in the batch
    POOL = "mean"     # pool='mean'

    key = jax.random.PRNGKey(0)
    key, kx, knc, kec = jax.random.split(key, 4)

    # node features
    x = jax.random.normal(kx, (N, IN), jnp.float32)

    # edges: directed ring (both directions) inside each 8-node graph, no self loops
    src_list, dst_list = [], []
    for g in range(B):
        base = g * 8
        for i in range(8):
            a, b_ = base + i, base + (i + 1) % 8
            src_list += [a, b_]
            dst_list += [b_, a]
    src = jnp.array(src_list, jnp.int32)
    dst = jnp.array(dst_list, jnp.int32)
    E = src.shape[0]

    batch = jnp.array([0] * 8 + [1] * 8, jnp.int32)
    node_centrality = jax.random.uniform(knc, (N,), jnp.float32, 0.1, 1.0)
    edge_centrality = jax.random.uniform(kec, (E,), jnp.float32, 0.1, 1.0)

    # densify graph structure (glue): norm_quantum matrix; the edge mask is
    # nq > 0 (all centralities here are strictly positive, self loops on diag)
    diag = jnp.arange(N)
    nq = jnp.zeros((N, N), jnp.float32).at[dst, src].set(edge_centrality)
    nq = nq.at[diag, diag].set(node_centrality)

    # pooling matrix (mean pool over each graph)
    one_hot = (batch[None, :] == jnp.arange(B)[:, None]).astype(jnp.float32)   # (B, N)
    counts = jnp.sum(one_hot, axis=1, keepdims=True)
    pool_mat = one_hot / counts if POOL == "mean" else one_hot

    params = make_params(key, IN, HIDDEN, OUT, LAYERS, HEADS)

    out = gat_forward(x, nq, pool_mat, params)
    out = jax.block_until_ready(out)
    assert out.shape == (B, OUT), out.shape
    assert bool(jnp.all(jnp.isfinite(out)))
    print("KERNEL_OK")
</pallas_src>

<mosaic_0001>
module attributes {stable_mosaic.version = 11 : i64} {
  func.func @project_kernel(%arg0: i32, %arg1: memref<8x8xbf16, #tpu.memory_space<vmem>>, %arg2: memref<8x32xbf16, #tpu.memory_space<vmem>>, %arg3: memref<32x4xbf16, #tpu.memory_space<vmem>>, %arg4: memref<8x32xbf16, #tpu.memory_space<vmem>>, %arg5: memref<8x4xf32, #tpu.memory_space<vmem>>) attributes {dimension_semantics = [#tpu.dimension_semantics<parallel>], iteration_bounds = array<i64: 2>, scalar_prefetch = 0 : i64, scratch_operands = 0 : i64, tpu.core_type = #tpu.core_type<tc>, window_params = [{transform_indices = @transform_0, window_bounds = array<i64: 8, 8>}, {pipeline_mode = #tpu.pipeline_mode<synchronous>, transform_indices = @transform_1, window_bounds = array<i64: 8, 32>}, {pipeline_mode = #tpu.pipeline_mode<synchronous>, transform_indices = @transform_2, window_bounds = array<i64: 32, 4>}, {transform_indices = @transform_3, window_bounds = array<i64: 8, 32>}, {transform_indices = @transform_4, window_bounds = array<i64: 8, 4>}]} {
    %c0 = arith.constant 0 : index
    %c0_0 = arith.constant 0 : index
    %0 = vector.load %arg1[%c0, %c0_0] : memref<8x8xbf16, #tpu.memory_space<vmem>>, vector<8x8xbf16>
    %c0_1 = arith.constant 0 : index
    %c0_2 = arith.constant 0 : index
    %1 = vector.load %arg2[%c0_1, %c0_2] : memref<8x32xbf16, #tpu.memory_space<vmem>>, vector<8x32xbf16>
    %cst = arith.constant dense<0.000000e+00> : vector<8x32xf32>
    %2 = tpu.matmul %0, %1, %cst {dimension_numbers = #tpu.dot_dimension_numbers<[1], [0], [0], [1], [0, 0, 1, 1], [], []>} : vector<8x8xbf16>, vector<8x32xbf16>, vector<8x32xf32> -> vector<8x32xf32>
    %3 = arith.truncf %2 : vector<8x32xf32> to vector<8x32xbf16>
    %c0_3 = arith.constant 0 : index
    %c0_4 = arith.constant 0 : index
    %4 = vector.load %arg4[%c0_3, %c0_4] : memref<8x32xbf16, #tpu.memory_space<vmem>>, vector<8x32xbf16>
    tpu.vector_store %arg4[%c0_3, %c0_4], %3 {strides = array<i32>} : memref<8x32xbf16, #tpu.memory_space<vmem>>, vector<8x32xbf16>,
    %c0_5 = arith.constant 0 : index
    %c0_6 = arith.constant 0 : index
    %5 = vector.load %arg3[%c0_5, %c0_6] : memref<32x4xbf16, #tpu.memory_space<vmem>>, vector<32x4xbf16>
    %cst_7 = arith.constant dense<0.000000e+00> : vector<8x4xf32>
    %6 = tpu.matmul %3, %5, %cst_7 {dimension_numbers = #tpu.dot_dimension_numbers<[1], [0], [0], [1], [0, 0, 1, 1], [], []>} : vector<8x32xbf16>, vector<32x4xbf16>, vector<8x4xf32> -> vector<8x4xf32>
    %c0_8 = arith.constant 0 : index
    %c0_9 = arith.constant 0 : index
    %7 = vector.load %arg5[%c0_8, %c0_9] : memref<8x4xf32, #tpu.memory_space<vmem>>, vector<8x4xf32>
    tpu.vector_store %arg5[%c0_8, %c0_9], %6 {strides = array<i32>} : memref<8x4xf32, #tpu.memory_space<vmem>>, vector<8x4xf32>,
    return
  }
  func.func @transform_0(%arg0: i32) -> (i32, i32) {
    %c0_i32 = arith.constant 0 : i32
    %c0_i32_0 = arith.constant 0 : i32
    return %arg0, %c0_i32 : i32, i32
  }
  func.func @transform_1(%arg0: i32) -> (i32, i32) {
    %c0_i32 = arith.constant 0 : i32
    %c0_i32_0 = arith.constant 0 : i32
    %c0_i32_1 = arith.constant 0 : i32
    return %c0_i32, %c0_i32_0 : i32, i32
  }
  func.func @transform_2(%arg0: i32) -> (i32, i32) {
    %c0_i32 = arith.constant 0 : i32
    %c0_i32_0 = arith.constant 0 : i32
    %c0_i32_1 = arith.constant 0 : i32
    return %c0_i32, %c0_i32_0 : i32, i32
  }
  func.func @transform_3(%arg0: i32) -> (i32, i32) {
    %c0_i32 = arith.constant 0 : i32
    %c0_i32_0 = arith.constant 0 : i32
    return %arg0, %c0_i32 : i32, i32
  }
  func.func @transform_4(%arg0: i32) -> (i32, i32) {
    %c0_i32 = arith.constant 0 : i32
    %c0_i32_0 = arith.constant 0 : i32
    return %arg0, %c0_i32 : i32, i32
  }
}

</mosaic_0001>

<llo_original>
// kernel: tpu_custom_call.1
$region0: #{tpu_custom_call.1}
  #allocation0 [shape = 'u32[]', space=smem, size = 0x4, offset = 0x4, fixed_abs, tag = 'smem constant byte address 0x4 - core index']
  #allocation1 [shape = 'u32[144,128]{1,0:T(1,128)}', space=vmem, size = 0x12000, scoped, tag = 'internal scratch']
  %s0 = inlined_call_operand.vmem [shape: bf16[16,8], index: 0, kind: input, shape index: {}]
  %s1 = inlined_call_operand.vmem [shape: bf16[8,32], index: 1, kind: input, shape index: {}]
  %s2 = inlined_call_operand.vmem [shape: bf16[32,4], index: 2, kind: input, shape index: {}]
  %s3 = inlined_call_operand.hbm [shape: bf16[16,32], index: 3, kind: output, shape index: {0}]
  %s4 = inlined_call_operand.vmem [shape: f32[16,4], index: 4, kind: output, shape index: {1}]
  %5 = xla_tuple %s3, %s4
  %s6 = sld [smem:[#allocation0]]
  $region53: #{tpu_custom_call.1} parent=0
    _
  %s8 = ssub.s32 1, %s6
  %s9 = scalar_select 0, %s8, %s6
  $region1: #{tpu_custom_call.1} parent=0
    #allocation2 [shape = 'u8[4096]{0}', space=vmem, size = 0x1000, scoped, tag = 'output window, operand 0']
    #allocation3 [shape = 's32[2]{0}', space=sflag, size = 0x8, scoped, tag = 'scoped memory for tpu_custom_call.1']
    %10 = vsyncpa [#allocation3], 0
    %s11 = scalar_lea.sflag [#allocation3], 1
    %12 = vsyncpa %s11, 0
    loop: start=0, step=1, limit=4
    $region2: #{tpu_custom_call.1} parent=1 // loop_pre_header
      _
    $region3: #{tpu_custom_call.1} parent=1 // loop_header
      %s14 = sphi 0, %s18
      %p15 = scmp.ge.s32.totalorder %s14, 4
      %s24 = sphi 0, %s26
      %s27 = sphi 0, %s24
      %s28 = sphi 0, %s27
      %s44 = sphi 0, %s28
      %s48 = sphi 0, %s48
      %s50 = sphi 0, %s48
      %s51 = sphi 0, %s50
      %s65 = sphi 0, %s51
      %s69 = sphi 0, %s69
      %s71 = sphi 0, %s69
      %s72 = sphi 0, %s71
      %s86 = sphi 0, %s72
      %s92 = sphi 0, %s94
      %s95 = sphi 0, %s92
      %s96 = sphi 0, %s95
      %s112 = sphi 0, %s96
      %s118 = sphi 0, %s120
      %s121 = sphi 0, %s118
      %s122 = sphi 0, %s121
      %s138 = sphi 0, %s122
    $region4: #{tpu_custom_call.1} parent=1 // loop_header_branch
      %17 = sbr.rel (%p15) target = $region8
    $region5: #{tpu_custom_call.1} parent=1 // loop_body
      %s19 = ssub.s32 %s14, 1
      %s20 = ssub.s32 %s14, 2
      %s21 = sadd.s32 %s14, 1
      %s22 = ssub.s32 %s14, %s21
      %p23 = scmp.eq.s32.totalorder %s22, 0
      %s25 = sadd.s32 %s24, 1
      %s26 = scalar_select %p23, %s24, %s25
      %p29 = pneg %p23
      %p30 = scmp.eq.s32.totalorder %s14, 1
      %p31 = por %p29, %p30
      %p32 = scmp.ne.s32.totalorder %s24, %s27
      %p33 = scmp.eq.s32.totalorder %s14, 0
      %p34 = por %p32, %p33
      %p35 = scmp.ne.s32.totalorder %s24, %s27
      %p36 = scmp.eq.s32.totalorder %s19, 1
      %p37 = por %p35, %p36
      %p38 = scmp.ne.s32.totalorder %s27, %s28
      %p39 = scmp.eq.s32.totalorder %s19, 0
      %p40 = por %p38, %p39
      %p41 = scmp.ne.s32.totalorder %s27, %s28
      %p42 = scmp.eq.s32.totalorder %s20, 1
      %p43 = por %p41, %p42
      %p45 = scmp.ne.s32.totalorder %s28, %s44
      %p46 = scmp.eq.s32.totalorder %s20, 0
      %p47 = por %p45, %p46
      %s49 = sadd.s32 %s48, 1
      %p52 = scmp.eq.s32.totalorder %s14, 1
      %p53 = scmp.ne.s32.totalorder %s48, %s50
      %p54 = scmp.eq.s32.totalorder %s14, 0
      %p55 = por %p53, %p54
      %p56 = scmp.ne.s32.totalorder %s48, %s50
      %p57 = scmp.eq.s32.totalorder %s19, 1
      %p58 = por %p56, %p57
      %p59 = scmp.ne.s32.totalorder %s50, %s51
      %p60 = scmp.eq.s32.totalorder %s19, 0
      %p61 = por %p59, %p60
      %p62 = scmp.ne.s32.totalorder %s50, %s51
      %p63 = scmp.eq.s32.totalorder %s20, 1
      %p64 = por %p62, %p63
      %p66 = scmp.ne.s32.totalorder %s51, %s65
      %p67 = scmp.eq.s32.totalorder %s20, 0
      %p68 = por %p66, %p67
      %s70 = sadd.s32 %s69, 1
      %p73 = scmp.eq.s32.totalorder %s14, 1
      %p74 = scmp.ne.s32.totalorder %s69, %s71
      %p75 = scmp.eq.s32.totalorder %s14, 0
      %p76 = por %p74, %p75
      %p77 = scmp.ne.s32.totalorder %s69, %s71
      %p78 = scmp.eq.s32.totalorder %s19, 1
      %p79 = por %p77, %p78
      %p80 = scmp.ne.s32.totalorder %s71, %s72
      %p81 = scmp.eq.s32.totalorder %s19, 0
      %p82 = por %p80, %p81
      %p83 = scmp.ne.s32.totalorder %s71, %s72
      %p84 = scmp.eq.s32.totalorder %s20, 1
      %p85 = por %p83, %p84
      %p87 = scmp.ne.s32.totalorder %s72, %s86
      %p88 = scmp.eq.s32.totalorder %s20, 0
      %p89 = por %p87, %p88
      %s90 = ssub.s32 %s14, %s21
      %p91 = scmp.eq.s32.totalorder %s90, 0
      %s93 = sadd.s32 %s92, 1
      %s94 = scalar_select %p91, %s92, %s93
      %p97 = pneg %p91
      %p98 = scmp.eq.s32.totalorder %s14, 1
      %p99 = por %p97, %p98
      %p100 = scmp.ne.s32.totalorder %s92, %s95
      %p101 = scmp.eq.s32.totalorder %s14, 0
      %p102 = por %p100, %p101
      %p103 = scmp.ne.s32.totalorder %s92, %s95
      %p104 = scmp.eq.s32.totalorder %s19, 1
      %p105 = por %p103, %p104
      %p106 = scmp.ne.s32.totalorder %s95, %s96
      %p107 = scmp.eq.s32.totalorder %s19, 0
      %p108 = por %p106, %p107
      %p109 = scmp.ne.s32.totalorder %s95, %s96
      %p110 = scmp.eq.s32.totalorder %s20, 1
      %p111 = por %p109, %p110
      %p113 = scmp.ne.s32.totalorder %s96, %s112
      %p114 = scmp.eq.s32.totalorder %s20, 0
      %p115 = por %p113, %p114
      %s116 = ssub.s32 %s14, %s21
      %p117 = scmp.eq.s32.totalorder %s116, 0
      %s119 = sadd.s32 %s118, 1
      %s120 = scalar_select %p117, %s118, %s119
      %p123 = pneg %p117
      %p124 = scmp.eq.s32.totalorder %s14, 1
      %p125 = por %p123, %p124
      %p126 = scmp.ne.s32.totalorder %s118, %s121
      %p127 = scmp.eq.s32.totalorder %s14, 0
      %p128 = por %p126, %p127
      %p129 = scmp.ne.s32.totalorder %s118, %s121
      %p130 = scmp.eq.s32.totalorder %s19, 1
      %p131 = por %p129, %p130
      %p132 = scmp.ne.s32.totalorder %s121, %s122
      %p133 = scmp.eq.s32.totalorder %s19, 0
      %p134 = por %p132, %p133
      %p135 = scmp.ne.s32.totalorder %s121, %s122
      %p136 = scmp.eq.s32.totalorder %s20, 1
      %p137 = por %p135, %p136
      %p139 = scmp.ne.s32.totalorder %s122, %s138
      %p140 = scmp.eq.s32.totalorder %s20, 0
      %p141 = por %p139, %p140
      %p142 = scmp.le.s32.totalorder 1, %s14
      %p143 = scmp.lt.s32.totalorder %s14, 3
      %p144 = pnand %p142, %p143
      %p145 = pneg %p144
      // Predicated region
      $region9: #{tpu_custom_call.1} parent=5 // pred_check
        _
      $region10: #{tpu_custom_call.1} parent=5 // pred_check_branch
        %147 = sbr.rel (%p144) target = $region12
      $region11: #{tpu_custom_call.1} parent=5 // pred_region
        %s148 = ssub.s32 %s14, 1
        // Predicated region
        $region13: #{tpu_custom_call.1} parent=11 // pred_check
          %p149 = pneg %p61
        $region14: #{tpu_custom_call.1} parent=11 // pred_check_branch
          %151 = sbr.rel (%p149) target = $region16
        $region15: #{tpu_custom_call.1} parent=11 // pred_region
          _
        $region16: #{tpu_custom_call.1} parent=11 // pred_fallthru
          _
        // Predicated region
        $region17: #{tpu_custom_call.1} parent=11 // pred_check
          %p152 = pneg %p82
        $region18: #{tpu_custom_call.1} parent=11 // pred_check_branch
          %154 = sbr.rel (%p152) target = $region20
        $region19: #{tpu_custom_call.1} parent=11 // pred_region
          _
        $region20: #{tpu_custom_call.1} parent=11 // pred_fallthru
          _
      $region12: #{tpu_custom_call.1} parent=5 // pred_fallthru
        _
      %p155 = scmp.lt.s32.totalorder %s14, 2
      // Predicated region
      $region21: #{tpu_custom_call.1} parent=5 // pred_check
        %p156 = pneg %p155
      $region22: #{tpu_custom_call.1} parent=5 // pred_check_branch
        %158 = sbr.rel (%p156) target = $region24
      $region23: #{tpu_custom_call.1} parent=5 // pred_region
        // Predicated region
        $region25: #{tpu_custom_call.1} parent=23 // pred_check
          %p159 = pneg %p34
        $region26: #{tpu_custom_call.1} parent=23 // pred_check_branch
          %161 = sbr.rel (%p159) target = $region28
        $region27: #{tpu_custom_call.1} parent=23 // pred_region
          %p162 = scmp.lt.s32.totalorder %s14, 1
          %s163 = scalar_select %p162, %s14, 1
          %s164 = smul.addr %s163, 4
          %s165 = scalar_lea.vmem %s0, %s164
        $region28: #{tpu_custom_call.1} parent=23 // pred_fallthru
          _
      $region24: #{tpu_custom_call.1} parent=5 // pred_fallthru
        _
      %p166 = scmp.le.s32.totalorder 1, %s14
      %p167 = scmp.lt.s32.totalorder %s14, 3
      %p168 = pnand %p166, %p167
      %p169 = pneg %p168
      // Predicated region
      $region29: #{tpu_custom_call.1} parent=5 // pred_check
        _
      $region30: #{tpu_custom_call.1} parent=5 // pred_check_branch
        %171 = sbr.rel (%p168) target = $region32
      $region31: #{tpu_custom_call.1} parent=5 // pred_region
        %s172 = ssub.s32 %s14, 1
        %p173 = scmp.lt.s32.totalorder %s19, 1
        %s174 = scalar_select %p173, %s19, 1
        %s175 = smul.addr %s174, 4
        %s176 = scalar_lea.vmem %s0, %s175
        %p177 = pneg %p40
        %p178 = pneg %p37
        %p179 = pneg %p61
        %p180 = pneg %p58
        %p181 = pneg %p82
        %p182 = pneg %p79
        %p183 = pneg %p108
        %p184 = pneg %p105
        %s185 = sand.u32 %s95, 1
        %s186 = scalar_lea.sflag [#allocation3], %s185
        %s187 = sand.u32 %s95, 1
        %s188 = smul.addr %s187, 4
        %s189 = scalar_lea.vmem [#allocation2], %s188
        %p190 = pneg %p134
        %p191 = pneg %p131
        %p192 = scmp.lt.s32.totalorder %s19, 1
        %s193 = scalar_select %p192, %s19, 1
        %s194 = smul.addr %s193, 8
        %s195 = scalar_lea.vmem %s4, %s194
        %p196 = scmp.lt.s32.totalorder %s19, 1
        %s197 = scalar_select %p196, %s19, 1
        %s198 = smul.addr %s197, 4
        %s199 = scalar_lea.vmem %s0, %s198
        %p200 = scmp.lt.s32.totalorder %s19, 1
        %s201 = scalar_select %p200, %s19, 1
        %s202 = smul.addr %s201, 8
        %s203 = scalar_lea.vmem %s4, %s202
        %v205 = vld [vmem:[%s199] sm:$0xf]
        %v206 = vld [vmem:[%s1] sm:$0xf]
        %vm207 = vcmask 64512
        %v209 = vsel %vm207, %v205, 0
        %vm211 = vcmask 1043456
        %v213 = vsel %vm211, %v206, 0
        %215 = vmatprep.subr.bf16.mxu0 0
        %216 = vmatpush1.bf16.msra.mxu0 0
        %217 = vmatprep.subr.bf16.mxu0 0
        %218 = vmatpush1.bf16.msra.mxu0 0
        %219 = vmatprep.subr.bf16.mxu0 0
        %220 = vmatpush1.bf16.msra.mxu0 0
        %221 = vmatprep.subr.bf16.mxu0 0
        %222 = vmatpush1.bf16.msra.mxu0 0
        %223 = vmatprep.subr.bf16.mxu0 0
        %224 = vmatpush1.bf16.msra.mxu0 0
        %225 = vmatprep.subr.bf16.mxu0 0
        %226 = vmatpush1.bf16.msra.mxu0 0
        %227 = vmatprep.subr.bf16.mxu0 0
        %228 = vmatpush1.bf16.msra.mxu0 0
        %229 = vmatprep.subr.bf16.mxu0 0
        %230 = vmatpush1.bf16.msra.mxu0 %v213
        %231 = vmatprep.subr.bf16.mxu0 0
        %232 = vmatpush2.bf16.msra.mxu0 0
        %233 = vmatprep.subr.bf16.mxu0 0
        %234 = vmatpush2.bf16.msra.mxu0 0
        %235 = vmatprep.subr.bf16.mxu0 0
        %236 = vmatpush2.bf16.msra.mxu0 0
        %237 = vmatprep.subr.bf16.mxu0 0
        %238 = vmatpush2.bf16.msra.mxu0 0
        %239 = vmatprep.subr.bf16.mxu0 0
        %240 = vmatpush2.bf16.msra.mxu0 0
        %241 = vmatprep.subr.bf16.mxu0 0
        %242 = vmatpush2.bf16.msra.mxu0 0
        %243 = vmatprep.subr.bf16.mxu0 0
        %244 = vmatpush2.bf16.msra.mxu0 0
        %245 = vmatprep.subr.bf16.mxu0 0
        %246 = vmatpush2.bf16.msra.mxu0 0
        %247 = vmatprep.mubr.bf16.mxu0 0
        %248 = vmatmul.mubr.bf16.gmra.mxu0 %v209
        %v249 = vpop.f32.mrf.mxu0
        %v250 = vadd.f32 0.0, %v249
        %v251 = vpop.f32.mrf.mxu0
        %v252 = vpop.f32.mrf.mxu0
        %v253 = vpop.f32.mrf.mxu0
        %254 = vdwg.mxu0
        %v255 = vpack.c.bf16 %v250, %v250
        %vm256 = vcmask 257024
        %257 = vst.msk [vmem:[%s189] sm:$0xf] %vm256, %v255
        %v258 = vld [vmem:[%s2] sm:$0xf]
        %v259 = vld [vmem:[%s2 + $0x4] sm:$0xf]
        %v260 = vld [vmem:[%s2 + $0x8] sm:$0xf]
        %v261 = vld [vmem:[%s2 + $0xc] sm:$0xf]
        %v266 = vunpack.c.l.b16 %v258
        %v267 = vunpack.c.l.b16 %v259
        %v268 = vunpack.c.l.b16 %v260
        %v269 = vunpack.c.l.b16 %v261
        %v270 = vpack.c.b16 %v267, %v266
        %v271 = vpack.c.b16 %v269, %v268
        %vm274 = vcmask 261120
        %v276 = vsel %vm274, %v255, 0
        %278 = vmatprep.subr.bf16.mxu0 0
        %279 = vmatpush1.bf16.msra.mxu0 0
        %280 = vmatprep.subr.bf16.mxu0 0
        %281 = vmatpush1.bf16.msra.mxu0 0
        %282 = vmatprep.subr.bf16.mxu0 0
        %283 = vmatpush1.bf16.msra.mxu0 0
        %284 = vmatprep.subr.bf16.mxu0 0
        %285 = vmatpush1.bf16.msra.mxu0 0
        %286 = vmatprep.subr.bf16.mxu0 0
        %287 = vmatpush1.bf16.msra.mxu0 0
        %288 = vmatprep.subr.bf16.mxu0 0
        %289 = vmatpush1.bf16.msra.mxu0 0
        %290 = vmatprep.subr.bf16.mxu0 0
        %291 = vmatpush1.bf16.msra.mxu0 %v271
        %292 = vmatprep.subr.bf16.mxu0 0
        %293 = vmatpush1.bf16.msra.mxu0 %v270
        %294 = vmatprep.subr.bf16.mxu0 0
        %295 = vmatpush2.bf16.msra.mxu0 0
        %296 = vmatprep.subr.bf16.mxu0 0
        %297 = vmatpush2.bf16.msra.mxu0 0
        %298 = vmatprep.subr.bf16.mxu0 0
        %299 = vmatpush2.bf16.msra.mxu0 0
        %300 = vmatprep.subr.bf16.mxu0 0
        %301 = vmatpush2.bf16.msra.mxu0 0
        %302 = vmatprep.subr.bf16.mxu0 0
        %303 = vmatpush2.bf16.msra.mxu0 0
        %304 = vmatprep.subr.bf16.mxu0 0
        %305 = vmatpush2.bf16.msra.mxu0 0
        %306 = vmatprep.subr.bf16.mxu0 0
        %307 = vmatpush2.bf16.msra.mxu0 0
        %308 = vmatprep.subr.bf16.mxu0 0
        %309 = vmatpush2.bf16.msra.mxu0 0
        %310 = vmatprep.mubr.bf16.mxu0 0
        %311 = vmatmul.mubr.bf16.gmra.mxu0 %v276
        %v312 = vpop.f32.mrf.mxu0
        %v313 = vadd.f32 0.0, %v312
        %v314 = vpop.f32.mrf.mxu0
        %v315 = vpop.f32.mrf.mxu0
        %v316 = vpop.f32.mrf.mxu0
        %317 = vdwg.mxu0
        %vm318 = vcmask 31744
        %319 = vst.msk [vmem:[%s203] sm:$0xff] %vm318, %v313
        %s320 = sand.u32 %s95, 1
        %s321 = scalar_lea.sflag [#allocation3], %s320
        %s322 = sand.u32 %s95, 1
        %s323 = smul.addr %s322, 4
        %s324 = scalar_lea.vmem [#allocation2], %s323
        %p325 = scmp.lt.s32.totalorder %s19, 1
        %s326 = scalar_select %p325, %s19, 1
        %s327 = smul.addr %s326, 8
        %s328 = scalar_lea.vmem %s4, %s327
        // Predicated region
        $region33: #{tpu_custom_call.1} parent=31 // pred_check
          %p329 = pneg %p105
        $region34: #{tpu_custom_call.1} parent=31 // pred_check_branch
          %331 = sbr.rel (%p329) target = $region36
        $region35: #{tpu_custom_call.1} parent=31 // pred_region
          %s333 = ssub.s32 64, 64
          %334 = vsyncadd %s321, %s333
          %s335 = smul.addr %s19, 64
          %s336 = scalar_lea.hbm %s3, %s335
          %s338 = sshll.u32 %s324, 4
          %s339 = int_to_ptr.vmem [resolvable:$true] %s338
          %341 = dma.vmem_to_hbm [thread:$0]  %s339, 64, %s336, %s321
        $region36: #{tpu_custom_call.1} parent=31 // pred_fallthru
          _
        // Predicated region
        $region37: #{tpu_custom_call.1} parent=31 // pred_check
          %p342 = pneg %p131
        $region38: #{tpu_custom_call.1} parent=31 // pred_check_branch
          %344 = sbr.rel (%p342) target = $region40
        $region39: #{tpu_custom_call.1} parent=31 // pred_region
          _
        $region40: #{tpu_custom_call.1} parent=31 // pred_fallthru
          _
      $region32: #{tpu_custom_call.1} parent=5 // pred_fallthru
        _
      %p345 = scmp.le.s32.totalorder 2, %s14
      // Predicated region
      $region41: #{tpu_custom_call.1} parent=5 // pred_check
        %p346 = pneg %p345
      $region42: #{tpu_custom_call.1} parent=5 // pred_check_branch
        %348 = sbr.rel (%p346) target = $region44
      $region43: #{tpu_custom_call.1} parent=5 // pred_region
        %s349 = ssub.s32 %s14, 2
        // Predicated region
        $region45: #{tpu_custom_call.1} parent=43 // pred_check
          %p350 = pneg %p111
        $region46: #{tpu_custom_call.1} parent=43 // pred_check_branch
          %352 = sbr.rel (%p350) target = $region48
        $region47: #{tpu_custom_call.1} parent=43 // pred_region
          %s353 = sand.u32 %s96, 1
          %s354 = scalar_lea.sflag [#allocation3], %s353
          %s355 = sand.u32 %s96, 1
          %s356 = smul.addr %s355, 4
          %s357 = scalar_lea.vmem [#allocation2], %s356
          %358 = dma.done %s354, 64
        $region48: #{tpu_custom_call.1} parent=43 // pred_fallthru
          _
        // Predicated region
        $region49: #{tpu_custom_call.1} parent=43 // pred_check
          %p359 = pneg %p137
        $region50: #{tpu_custom_call.1} parent=43 // pred_check_branch
          %361 = sbr.rel (%p359) target = $region52
        $region51: #{tpu_custom_call.1} parent=43 // pred_region
          %p362 = scmp.lt.s32.totalorder %s20, 1
          %s363 = scalar_select %p362, %s20, 1
          %s364 = smul.addr %s363, 8
          %s365 = scalar_lea.vmem %s4, %s364
        $region52: #{tpu_custom_call.1} parent=43 // pred_fallthru
          _
      $region44: #{tpu_custom_call.1} parent=5 // pred_fallthru
        _
    $region6: #{tpu_custom_call.1} parent=1 // loop_footer
      %s18 = sadd.s32 1, %s14
    $region7: #{tpu_custom_call.1} parent=1 // loop_footer_branch
      %13 = sbr.rel target = $region3
    $region8: #{tpu_custom_call.1} parent=1 // loop_exit
      _
    %366 = vsyncpa [#allocation3], 1
    %s367 = scalar_lea.sflag [#allocation3], 1
    %368 = vsyncpa %s367, 1

</llo_original>
